<compile_context>
chip_gen: v7x
topology: tpu7x:2x2x1
jax: 0.10.0
libtpu: 0.0.40
codegen_flags: <defaults>
</compile_context>

<pallas_src>
import jax
import jax.numpy as jnp
from jax.experimental import pallas as pl
from jax.experimental.pallas import tpu as pltpu

N_HIDDEN_LAYERS = 2
N_NEURONS = 9
N_IN = 1
N_OUT = 1

FEAT_PAD = 16        # hidden dim 9 zero-padded to 16 sublanes (2 f32 sublane tiles)
TB_MAX = 2048        # max batch tile (lanes per grid step); ~a few hundred KB of VMEM


def _pinn_kernel(t_ref,
                 w0_ref, b0_ref,
                 w1_ref, b1_ref,
                 w2_ref, b2_ref,
                 w3_ref, b3_ref,
                 o_ref):
    t = t_ref[...]                                               # (1, TB), batch in lanes
    # Layer 0: Linear(1, 9) + tanh as a broadcast FMA on the VPU (feature rows x batch lanes).
    h = jnp.tanh(w0_ref[...] * t + b0_ref[...])                  # (16, TB); rows 9.. stay 0
    # Hidden layers: Linear(9, 9) + tanh as small (16,16) x (16,TB) MXU dots, batch in lanes.
    h = jnp.tanh(jnp.dot(w1_ref[...], h,
                         preferred_element_type=jnp.float32) + b1_ref[...])
    h = jnp.tanh(jnp.dot(w2_ref[...], h,
                         preferred_element_type=jnp.float32) + b2_ref[...])
    # Output layer: Linear(9, 1) as elementwise mul + sublane reduction; lane-dense store.
    out = jnp.sum(w3_ref[...] * h, axis=0, keepdims=True)        # (1, TB)
    o_ref[...] = out + b3_ref[0, 0]                              # scalar bias from SMEM


def _pad2d(a, rows, cols):
    a = jnp.asarray(a, jnp.float32)
    return jnp.zeros((rows, cols), jnp.float32).at[:a.shape[0], :a.shape[1]].set(a)


def prepare_params(params):
    """Zero-pad raw (W, b) params to kernel layout ONCE (outside the per-call jit).

    params: [(w0 (1,9), b0 (9,)), (w1 (9,9), b1), (w2 (9,9), b2), (w3 (9,1), b3 (1,))]
    W is stored (in, out).  Returns a flat tuple of padded arrays in kernel arg order.
    """
    (w0, b0), (w1, b1), (w2, b2), (w3, b3) = params
    return (
        _pad2d(w0.T, FEAT_PAD, 1),                 # (16, 1)  Linear(1,9) weight column
        _pad2d(b0[:, None], FEAT_PAD, 1),          # (16, 1)
        _pad2d(w1.T, FEAT_PAD, FEAT_PAD),          # (16, 16) (out, in)
        _pad2d(b1[:, None], FEAT_PAD, 1),
        _pad2d(w2.T, FEAT_PAD, FEAT_PAD),          # (16, 16)
        _pad2d(b2[:, None], FEAT_PAD, 1),
        _pad2d(w3, FEAT_PAD, 1),                   # (16, 1)  Linear(9,1) weight column
        jnp.asarray(b3, jnp.float32).reshape(1, 1),  # (1, 1)  scalar bias -> SMEM
    )


def _choose_tiling(n):
    """Pick (TB, n_pad): TB multiple of 128, up to TB_MAX, with >=2 grid steps if possible."""
    n128 = ((n + 127) // 128) * 128              # round batch up to a full lane span
    tb = min(TB_MAX, n128)
    if n128 > 128 and n128 // tb < 2:            # v7x: keep both TensorCores busy
        tb = max(128, ((n128 // 2) // 128) * 128)
    n_pad = ((n128 + tb - 1) // tb) * tb
    return tb, n_pad


@jax.jit
def pinn_forward(t, padded_params):
    """t: (N, 1) float32.  padded_params: output of prepare_params()."""
    n = t.shape[0]
    tb, n_pad = _choose_tiling(n)
    # Lane-dense input stream: (1, n_pad) with batch along lanes.
    t_row = jnp.pad(t.astype(jnp.float32).reshape(1, n), ((0, 0), (0, n_pad - n)))

    feat_col = pl.BlockSpec((FEAT_PAD, 1), lambda i: (0, 0))           # grid-invariant
    feat_mat = pl.BlockSpec((FEAT_PAD, FEAT_PAD), lambda i: (0, 0))    # grid-invariant

    out = pl.pallas_call(
        _pinn_kernel,
        out_shape=jax.ShapeDtypeStruct((1, n_pad), jnp.float32),
        grid_spec=pltpu.PrefetchScalarGridSpec(
            num_scalar_prefetch=0,
            grid=(n_pad // tb,),
            in_specs=[
                pl.BlockSpec((1, tb), lambda i: (0, i)),               # lane-dense input
                feat_col, feat_col,                                    # w0 column, b0
                feat_mat, feat_col,                                    # w1^T, b1
                feat_mat, feat_col,                                    # w2^T, b2
                feat_col,                                              # w3 column
                pl.BlockSpec(memory_space=pltpu.MemorySpace.SMEM),     # b3 scalar
            ],
            out_specs=pl.BlockSpec((1, tb), lambda i: (0, i)),         # lane-dense output
        ),
        compiler_params=pltpu.CompilerParams(
            dimension_semantics=("parallel",)),
    )(t_row, *padded_params)

    return out[0, :n, None]                                            # (N, 1)


def init_params(key):
    """Xavier-normal weights, zero biases (matches the torch init). W stored (in, out)."""
    dims = [N_IN] + [N_NEURONS] * (N_HIDDEN_LAYERS + 1) + [N_OUT]
    params = []
    for i in range(len(dims) - 1):
        fan_in, fan_out = dims[i], dims[i + 1]
        key, sub = jax.random.split(key)
        std = (2.0 / (fan_in + fan_out)) ** 0.5
        w = std * jax.random.normal(sub, (fan_in, fan_out), jnp.float32)
        b = jnp.zeros((fan_out,), jnp.float32)
        params.append((w, b))
    return params


def pinn_reference(t, params):
    h = t
    for i, (w, b) in enumerate(params):
        h = h @ w + b
        if i < len(params) - 1:
            h = jnp.tanh(h)
    return h


if __name__ == "__main__":
    key = jax.random.PRNGKey(0)
    kp, kt = jax.random.split(key)

    params = init_params(kp)
    padded = prepare_params(params)   # pad once, outside the per-call jit

    N = 1000                          # pads to 1024 -> TB=512, 2 grid steps (tiling + mask)
    t = jax.random.uniform(kt, (N, 1), jnp.float32)

    out = pinn_forward(t, padded)
    out = jax.block_until_ready(out)

    ref = pinn_reference(t, params)
    assert out.shape == (N, 1)
    assert jnp.allclose(out, ref, atol=1e-5, rtol=1e-5), (out[:4], ref[:4])

    print("KERNEL_OK")
</pallas_src>

<mosaic_0001>
module attributes {stable_mosaic.version = 11 : i64} {
  func.func @_pinn_kernel(%arg0: i32, %arg1: memref<1x512xf32, #tpu.memory_space<vmem>>, %arg2: memref<16x1xf32, #tpu.memory_space<vmem>>, %arg3: memref<16x1xf32, #tpu.memory_space<vmem>>, %arg4: memref<16x16xf32, #tpu.memory_space<vmem>>, %arg5: memref<16x1xf32, #tpu.memory_space<vmem>>, %arg6: memref<16x16xf32, #tpu.memory_space<vmem>>, %arg7: memref<16x1xf32, #tpu.memory_space<vmem>>, %arg8: memref<16x1xf32, #tpu.memory_space<vmem>>, %arg9: memref<1x1xf32, #tpu.memory_space<smem>>, %arg10: memref<1x512xf32, #tpu.memory_space<vmem>>) attributes {dimension_semantics = [#tpu.dimension_semantics<parallel>], iteration_bounds = array<i64: 2>, scalar_prefetch = 0 : i64, scratch_operands = 0 : i64, tpu.core_type = #tpu.core_type<tc>, window_params = [{transform_indices = @transform_0, window_bounds = array<i64: 1, 512>}, {pipeline_mode = #tpu.pipeline_mode<synchronous>, transform_indices = @transform_1, window_bounds = array<i64: 16, 1>}, {pipeline_mode = #tpu.pipeline_mode<synchronous>, transform_indices = @transform_2, window_bounds = array<i64: 16, 1>}, {pipeline_mode = #tpu.pipeline_mode<synchronous>, transform_indices = @transform_3, window_bounds = array<i64: 16, 16>}, {pipeline_mode = #tpu.pipeline_mode<synchronous>, transform_indices = @transform_4, window_bounds = array<i64: 16, 1>}, {pipeline_mode = #tpu.pipeline_mode<synchronous>, transform_indices = @transform_5, window_bounds = array<i64: 16, 16>}, {pipeline_mode = #tpu.pipeline_mode<synchronous>, transform_indices = @transform_6, window_bounds = array<i64: 16, 1>}, {pipeline_mode = #tpu.pipeline_mode<synchronous>, transform_indices = @transform_7, window_bounds = array<i64: 16, 1>}, {transform_indices = @transform_8, window_bounds = array<i64: 1, 1>}, {transform_indices = @transform_9, window_bounds = array<i64: 1, 512>}]} {
    %c0 = arith.constant 0 : index
    %c0_0 = arith.constant 0 : index
    %0 = vector.load %arg1[%c0, %c0_0] : memref<1x512xf32, #tpu.memory_space<vmem>>, vector<1x512xf32>
    %c0_1 = arith.constant 0 : index
    %c0_2 = arith.constant 0 : index
    %1 = vector.load %arg2[%c0_1, %c0_2] : memref<16x1xf32, #tpu.memory_space<vmem>>, vector<16x1xf32>
    %2 = vector.broadcast %1 : vector<16x1xf32> to vector<16x512xf32>
    %3 = vector.broadcast %0 : vector<1x512xf32> to vector<16x512xf32>
    %4 = arith.mulf %2, %3 : vector<16x512xf32>
    %c0_3 = arith.constant 0 : index
    %c0_4 = arith.constant 0 : index
    %5 = vector.load %arg3[%c0_3, %c0_4] : memref<16x1xf32, #tpu.memory_space<vmem>>, vector<16x1xf32>
    %6 = vector.broadcast %5 : vector<16x1xf32> to vector<16x512xf32>
    %7 = arith.addf %4, %6 : vector<16x512xf32>
    %8 = math.tanh %7 : vector<16x512xf32>
    %c0_5 = arith.constant 0 : index
    %c0_6 = arith.constant 0 : index
    %9 = vector.load %arg4[%c0_5, %c0_6] : memref<16x16xf32, #tpu.memory_space<vmem>>, vector<16x16xf32>
    %cst = arith.constant dense<0.000000e+00> : vector<16x512xf32>
    %10 = tpu.matmul %9, %8, %cst {dimension_numbers = #tpu.dot_dimension_numbers<[1], [0], [0], [1], [0, 0, 1, 1], [], []>} : vector<16x16xf32>, vector<16x512xf32>, vector<16x512xf32> -> vector<16x512xf32>
    %c0_7 = arith.constant 0 : index
    %c0_8 = arith.constant 0 : index
    %11 = vector.load %arg5[%c0_7, %c0_8] : memref<16x1xf32, #tpu.memory_space<vmem>>, vector<16x1xf32>
    %12 = vector.broadcast %11 : vector<16x1xf32> to vector<16x512xf32>
    %13 = arith.addf %10, %12 : vector<16x512xf32>
    %14 = math.tanh %13 : vector<16x512xf32>
    %c0_9 = arith.constant 0 : index
    %c0_10 = arith.constant 0 : index
    %15 = vector.load %arg6[%c0_9, %c0_10] : memref<16x16xf32, #tpu.memory_space<vmem>>, vector<16x16xf32>
    %cst_11 = arith.constant dense<0.000000e+00> : vector<16x512xf32>
    %16 = tpu.matmul %15, %14, %cst_11 {dimension_numbers = #tpu.dot_dimension_numbers<[1], [0], [0], [1], [0, 0, 1, 1], [], []>} : vector<16x16xf32>, vector<16x512xf32>, vector<16x512xf32> -> vector<16x512xf32>
    %c0_12 = arith.constant 0 : index
    %c0_13 = arith.constant 0 : index
    %17 = vector.load %arg7[%c0_12, %c0_13] : memref<16x1xf32, #tpu.memory_space<vmem>>, vector<16x1xf32>
    %18 = vector.broadcast %17 : vector<16x1xf32> to vector<16x512xf32>
    %19 = arith.addf %16, %18 : vector<16x512xf32>
    %20 = math.tanh %19 : vector<16x512xf32>
    %c0_14 = arith.constant 0 : index
    %c0_15 = arith.constant 0 : index
    %21 = vector.load %arg8[%c0_14, %c0_15] : memref<16x1xf32, #tpu.memory_space<vmem>>, vector<16x1xf32>
    %22 = vector.broadcast %21 : vector<16x1xf32> to vector<16x512xf32>
    %23 = arith.mulf %22, %20 : vector<16x512xf32>
    %cst_16 = arith.constant dense<0.000000e+00> : vector<512xf32>
    %24 = vector.multi_reduction <add>, %23, %cst_16 [0] : vector<16x512xf32> to vector<512xf32>
    %25 = vector.shape_cast %24 : vector<512xf32> to vector<1x512xf32>
    %c0_17 = arith.constant 0 : index
    %c0_18 = arith.constant 0 : index
    %26 = memref.load %arg9[%c0_17, %c0_18] : memref<1x1xf32, #tpu.memory_space<smem>>
    %27 = vector.broadcast %26 : f32 to vector<1x512xf32>
    %28 = arith.addf %25, %27 : vector<1x512xf32>
    %c0_19 = arith.constant 0 : index
    %c0_20 = arith.constant 0 : index
    %29 = vector.load %arg10[%c0_19, %c0_20] : memref<1x512xf32, #tpu.memory_space<vmem>>, vector<1x512xf32>
    tpu.vector_store %arg10[%c0_19, %c0_20], %28 {strides = array<i32>} : memref<1x512xf32, #tpu.memory_space<vmem>>, vector<1x512xf32>,
    return
  }
  func.func @transform_0(%arg0: i32) -> (i32, i32) {
    %c0_i32 = arith.constant 0 : i32
    %c0_i32_0 = arith.constant 0 : i32
    return %c0_i32, %arg0 : i32, i32
  }
  func.func @transform_1(%arg0: i32) -> (i32, i32) {
    %c0_i32 = arith.constant 0 : i32
    %c0_i32_0 = arith.constant 0 : i32
    %c0_i32_1 = arith.constant 0 : i32
    return %c0_i32, %c0_i32_0 : i32, i32
  }
  func.func @transform_2(%arg0: i32) -> (i32, i32) {
    %c0_i32 = arith.constant 0 : i32
    %c0_i32_0 = arith.constant 0 : i32
    %c0_i32_1 = arith.constant 0 : i32
    return %c0_i32, %c0_i32_0 : i32, i32
  }
  func.func @transform_3(%arg0: i32) -> (i32, i32) {
    %c0_i32 = arith.constant 0 : i32
    %c0_i32_0 = arith.constant 0 : i32
    %c0_i32_1 = arith.constant 0 : i32
    return %c0_i32, %c0_i32_0 : i32, i32
  }
  func.func @transform_4(%arg0: i32) -> (i32, i32) {
    %c0_i32 = arith.constant 0 : i32
    %c0_i32_0 = arith.constant 0 : i32
    %c0_i32_1 = arith.constant 0 : i32
    return %c0_i32, %c0_i32_0 : i32, i32
  }
  func.func @transform_5(%arg0: i32) -> (i32, i32) {
    %c0_i32 = arith.constant 0 : i32
    %c0_i32_0 = arith.constant 0 : i32
    %c0_i32_1 = arith.constant 0 : i32
    return %c0_i32, %c0_i32_0 : i32, i32
  }
  func.func @transform_6(%arg0: i32) -> (i32, i32) {
    %c0_i32 = arith.constant 0 : i32
    %c0_i32_0 = arith.constant 0 : i32
    %c0_i32_1 = arith.constant 0 : i32
    return %c0_i32, %c0_i32_0 : i32, i32
  }
  func.func @transform_7(%arg0: i32) -> (i32, i32) {
    %c0_i32 = arith.constant 0 : i32
    %c0_i32_0 = arith.constant 0 : i32
    %c0_i32_1 = arith.constant 0 : i32
    return %c0_i32, %c0_i32_0 : i32, i32
  }
  func.func @transform_8(%arg0: i32) -> (i32, i32) {
    %c0_i32 = arith.constant 0 : i32
    %c0_i32_0 = arith.constant 0 : i32
    %c0_i32_1 = arith.constant 0 : i32
    return %c0_i32, %c0_i32_0 : i32, i32
  }
  func.func @transform_9(%arg0: i32) -> (i32, i32) {
    %c0_i32 = arith.constant 0 : i32
    %c0_i32_0 = arith.constant 0 : i32
    return %c0_i32, %arg0 : i32, i32
  }
}

</mosaic_0001>

<llo_original>
// kernel: pinn_forward.1
$region0: #{pinn_forward.1}
  #allocation0 [shape = 'u32[]', space=smem, size = 0x4, offset = 0x4, fixed_abs, tag = 'smem constant byte address 0x4 - core index']
  #allocation1 [shape = 'u32[144,128]{1,0:T(1,128)}', space=vmem, size = 0x12000, scoped, tag = 'internal scratch']
  #allocation2 [shape = 'f32[1,1]{1,0:T(1,128)S(6)}', space=smem, size = 0x200, scoped, tag = 'scoped memory for pinn_forward.1']
  %s0 = inlined_call_operand.vmem [shape: f32[1,1024], index: 0, kind: input, shape index: {}]
  %s1 = inlined_call_operand.vmem [shape: f32[16,1], index: 1, kind: input, shape index: {}]
  %s2 = inlined_call_operand.vmem [shape: f32[16,1], index: 2, kind: input, shape index: {}]
  %s3 = inlined_call_operand.vmem [shape: f32[16,16], index: 3, kind: input, shape index: {}]
  %s4 = inlined_call_operand.vmem [shape: f32[16,1], index: 4, kind: input, shape index: {}]
  %s5 = inlined_call_operand.vmem [shape: f32[16,16], index: 5, kind: input, shape index: {}]
  %s6 = inlined_call_operand.vmem [shape: f32[16,1], index: 6, kind: input, shape index: {}]
  %s7 = inlined_call_operand.vmem [shape: f32[16,1], index: 7, kind: input, shape index: {}]
  %s8 = inlined_call_operand.<no memory space> [shape: f32[1,1], index: 8, kind: input, shape index: {}]
  %s9 = inlined_call_operand.vmem [shape: f32[1,1024], index: 9, kind: output, shape index: {}]
  %s10 = sld [smem:[#allocation0]]
  $region69: #{pinn_forward.1} parent=0
    _
  %s12 = ssub.s32 1, %s10
  %s13 = scalar_select 0, %s12, %s10
  %14 = sst [smem:[#allocation2]] %s8
  loop: start=0, step=1, limit=4
  $region2: #{pinn_forward.1} parent=0 // loop_pre_header
    _
  $region3: #{pinn_forward.1} parent=0 // loop_header
    %s16 = sphi 0, %s20
    %p17 = scmp.ge.s32.totalorder %s16, 4
    %s26 = sphi 0, %s28
    %s29 = sphi 0, %s26
    %s30 = sphi 0, %s29
    %s46 = sphi 0, %s30
    %s50 = sphi 0, %s50
    %s52 = sphi 0, %s50
    %s53 = sphi 0, %s52
    %s67 = sphi 0, %s53
    %s71 = sphi 0, %s71
    %s73 = sphi 0, %s71
    %s74 = sphi 0, %s73
    %s88 = sphi 0, %s74
    %s92 = sphi 0, %s92
    %s94 = sphi 0, %s92
    %s95 = sphi 0, %s94
    %s109 = sphi 0, %s95
    %s113 = sphi 0, %s113
    %s115 = sphi 0, %s113
    %s116 = sphi 0, %s115
    %s130 = sphi 0, %s116
    %s134 = sphi 0, %s134
    %s136 = sphi 0, %s134
    %s137 = sphi 0, %s136
    %s151 = sphi 0, %s137
    %s155 = sphi 0, %s155
    %s157 = sphi 0, %s155
    %s158 = sphi 0, %s157
    %s172 = sphi 0, %s158
    %s176 = sphi 0, %s176
    %s178 = sphi 0, %s176
    %s179 = sphi 0, %s178
    %s193 = sphi 0, %s179
    %s197 = sphi 0, %s197
    %s199 = sphi 0, %s197
    %s200 = sphi 0, %s199
    %s214 = sphi 0, %s200
    %s220 = sphi 0, %s222
    %s223 = sphi 0, %s220
    %s224 = sphi 0, %s223
    %s240 = sphi 0, %s224
  $region4: #{pinn_forward.1} parent=0 // loop_header_branch
    %19 = sbr.rel (%p17) target = $region8
  $region5: #{pinn_forward.1} parent=0 // loop_body
    %s21 = ssub.s32 %s16, 1
    %s22 = ssub.s32 %s16, 2
    %s23 = sadd.s32 %s16, 1
    %s24 = ssub.s32 %s16, %s23
    %p25 = scmp.eq.s32.totalorder %s24, 0
    %s27 = sadd.s32 %s26, 1
    %s28 = scalar_select %p25, %s26, %s27
    %p31 = pneg %p25
    %p32 = scmp.eq.s32.totalorder %s16, 1
    %p33 = por %p31, %p32
    %p34 = scmp.ne.s32.totalorder %s26, %s29
    %p35 = scmp.eq.s32.totalorder %s16, 0
    %p36 = por %p34, %p35
    %p37 = scmp.ne.s32.totalorder %s26, %s29
    %p38 = scmp.eq.s32.totalorder %s21, 1
    %p39 = por %p37, %p38
    %p40 = scmp.ne.s32.totalorder %s29, %s30
    %p41 = scmp.eq.s32.totalorder %s21, 0
    %p42 = por %p40, %p41
    %p43 = scmp.ne.s32.totalorder %s29, %s30
    %p44 = scmp.eq.s32.totalorder %s22, 1
    %p45 = por %p43, %p44
    %p47 = scmp.ne.s32.totalorder %s30, %s46
    %p48 = scmp.eq.s32.totalorder %s22, 0
    %p49 = por %p47, %p48
    %s51 = sadd.s32 %s50, 1
    %p54 = scmp.eq.s32.totalorder %s16, 1
    %p55 = scmp.ne.s32.totalorder %s50, %s52
    %p56 = scmp.eq.s32.totalorder %s16, 0
    %p57 = por %p55, %p56
    %p58 = scmp.ne.s32.totalorder %s50, %s52
    %p59 = scmp.eq.s32.totalorder %s21, 1
    %p60 = por %p58, %p59
    %p61 = scmp.ne.s32.totalorder %s52, %s53
    %p62 = scmp.eq.s32.totalorder %s21, 0
    %p63 = por %p61, %p62
    %p64 = scmp.ne.s32.totalorder %s52, %s53
    %p65 = scmp.eq.s32.totalorder %s22, 1
    %p66 = por %p64, %p65
    %p68 = scmp.ne.s32.totalorder %s53, %s67
    %p69 = scmp.eq.s32.totalorder %s22, 0
    %p70 = por %p68, %p69
    %s72 = sadd.s32 %s71, 1
    %p75 = scmp.eq.s32.totalorder %s16, 1
    %p76 = scmp.ne.s32.totalorder %s71, %s73
    %p77 = scmp.eq.s32.totalorder %s16, 0
    %p78 = por %p76, %p77
    %p79 = scmp.ne.s32.totalorder %s71, %s73
    %p80 = scmp.eq.s32.totalorder %s21, 1
    %p81 = por %p79, %p80
    %p82 = scmp.ne.s32.totalorder %s73, %s74
    %p83 = scmp.eq.s32.totalorder %s21, 0
    %p84 = por %p82, %p83
    %p85 = scmp.ne.s32.totalorder %s73, %s74
    %p86 = scmp.eq.s32.totalorder %s22, 1
    %p87 = por %p85, %p86
    %p89 = scmp.ne.s32.totalorder %s74, %s88
    %p90 = scmp.eq.s32.totalorder %s22, 0
    %p91 = por %p89, %p90
    %s93 = sadd.s32 %s92, 1
    %p96 = scmp.eq.s32.totalorder %s16, 1
    %p97 = scmp.ne.s32.totalorder %s92, %s94
    %p98 = scmp.eq.s32.totalorder %s16, 0
    %p99 = por %p97, %p98
    %p100 = scmp.ne.s32.totalorder %s92, %s94
    %p101 = scmp.eq.s32.totalorder %s21, 1
    %p102 = por %p100, %p101
    %p103 = scmp.ne.s32.totalorder %s94, %s95
    %p104 = scmp.eq.s32.totalorder %s21, 0
    %p105 = por %p103, %p104
    %p106 = scmp.ne.s32.totalorder %s94, %s95
    %p107 = scmp.eq.s32.totalorder %s22, 1
    %p108 = por %p106, %p107
    %p110 = scmp.ne.s32.totalorder %s95, %s109
    %p111 = scmp.eq.s32.totalorder %s22, 0
    %p112 = por %p110, %p111
    %s114 = sadd.s32 %s113, 1
    %p117 = scmp.eq.s32.totalorder %s16, 1
    %p118 = scmp.ne.s32.totalorder %s113, %s115
    %p119 = scmp.eq.s32.totalorder %s16, 0
    %p120 = por %p118, %p119
    %p121 = scmp.ne.s32.totalorder %s113, %s115
    %p122 = scmp.eq.s32.totalorder %s21, 1
    %p123 = por %p121, %p122
    %p124 = scmp.ne.s32.totalorder %s115, %s116
    %p125 = scmp.eq.s32.totalorder %s21, 0
    %p126 = por %p124, %p125
    %p127 = scmp.ne.s32.totalorder %s115, %s116
    %p128 = scmp.eq.s32.totalorder %s22, 1
    %p129 = por %p127, %p128
    %p131 = scmp.ne.s32.totalorder %s116, %s130
    %p132 = scmp.eq.s32.totalorder %s22, 0
    %p133 = por %p131, %p132
    %s135 = sadd.s32 %s134, 1
    %p138 = scmp.eq.s32.totalorder %s16, 1
    %p139 = scmp.ne.s32.totalorder %s134, %s136
    %p140 = scmp.eq.s32.totalorder %s16, 0
    %p141 = por %p139, %p140
    %p142 = scmp.ne.s32.totalorder %s134, %s136
    %p143 = scmp.eq.s32.totalorder %s21, 1
    %p144 = por %p142, %p143
    %p145 = scmp.ne.s32.totalorder %s136, %s137
    %p146 = scmp.eq.s32.totalorder %s21, 0
    %p147 = por %p145, %p146
    %p148 = scmp.ne.s32.totalorder %s136, %s137
    %p149 = scmp.eq.s32.totalorder %s22, 1
    %p150 = por %p148, %p149
    %p152 = scmp.ne.s32.totalorder %s137, %s151
    %p153 = scmp.eq.s32.totalorder %s22, 0
    %p154 = por %p152, %p153
    %s156 = sadd.s32 %s155, 1
    %p159 = scmp.eq.s32.totalorder %s16, 1
    %p160 = scmp.ne.s32.totalorder %s155, %s157
    %p161 = scmp.eq.s32.totalorder %s16, 0
    %p162 = por %p160, %p161
    %p163 = scmp.ne.s32.totalorder %s155, %s157
    %p164 = scmp.eq.s32.totalorder %s21, 1
    %p165 = por %p163, %p164
    %p166 = scmp.ne.s32.totalorder %s157, %s158
    %p167 = scmp.eq.s32.totalorder %s21, 0
    %p168 = por %p166, %p167
    %p169 = scmp.ne.s32.totalorder %s157, %s158
    %p170 = scmp.eq.s32.totalorder %s22, 1
    %p171 = por %p169, %p170
    %p173 = scmp.ne.s32.totalorder %s158, %s172
    %p174 = scmp.eq.s32.totalorder %s22, 0
    %p175 = por %p173, %p174
    %s177 = sadd.s32 %s176, 1
    %p180 = scmp.eq.s32.totalorder %s16, 1
    %p181 = scmp.ne.s32.totalorder %s176, %s178
    %p182 = scmp.eq.s32.totalorder %s16, 0
    %p183 = por %p181, %p182
    %p184 = scmp.ne.s32.totalorder %s176, %s178
    %p185 = scmp.eq.s32.totalorder %s21, 1
    %p186 = por %p184, %p185
    %p187 = scmp.ne.s32.totalorder %s178, %s179
    %p188 = scmp.eq.s32.totalorder %s21, 0
    %p189 = por %p187, %p188
    %p190 = scmp.ne.s32.totalorder %s178, %s179
    %p191 = scmp.eq.s32.totalorder %s22, 1
    %p192 = por %p190, %p191
    %p194 = scmp.ne.s32.totalorder %s179, %s193
    %p195 = scmp.eq.s32.totalorder %s22, 0
    %p196 = por %p194, %p195
    %s198 = sadd.s32 %s197, 1
    %p201 = scmp.eq.s32.totalorder %s16, 1
    %p202 = scmp.ne.s32.totalorder %s197, %s199
    %p203 = scmp.eq.s32.totalorder %s16, 0
    %p204 = por %p202, %p203
    %p205 = scmp.ne.s32.totalorder %s197, %s199
    %p206 = scmp.eq.s32.totalorder %s21, 1
    %p207 = por %p205, %p206
    %p208 = scmp.ne.s32.totalorder %s199, %s200
    %p209 = scmp.eq.s32.totalorder %s21, 0
    %p210 = por %p208, %p209
    %p211 = scmp.ne.s32.totalorder %s199, %s200
    %p212 = scmp.eq.s32.totalorder %s22, 1
    %p213 = por %p211, %p212
    %p215 = scmp.ne.s32.totalorder %s200, %s214
    %p216 = scmp.eq.s32.totalorder %s22, 0
    %p217 = por %p215, %p216
    %s218 = ssub.s32 %s16, %s23
    %p219 = scmp.eq.s32.totalorder %s218, 0
    %s221 = sadd.s32 %s220, 1
    %s222 = scalar_select %p219, %s220, %s221
    %p225 = pneg %p219
    %p226 = scmp.eq.s32.totalorder %s16, 1
    %p227 = por %p225, %p226
    %p228 = scmp.ne.s32.totalorder %s220, %s223
    %p229 = scmp.eq.s32.totalorder %s16, 0
    %p230 = por %p228, %p229
    %p231 = scmp.ne.s32.totalorder %s220, %s223
    %p232 = scmp.eq.s32.totalorder %s21, 1
    %p233 = por %p231, %p232
    %p234 = scmp.ne.s32.totalorder %s223, %s224
    %p235 = scmp.eq.s32.totalorder %s21, 0
    %p236 = por %p234, %p235
    %p237 = scmp.ne.s32.totalorder %s223, %s224
    %p238 = scmp.eq.s32.totalorder %s22, 1
    %p239 = por %p237, %p238
    %p241 = scmp.ne.s32.totalorder %s224, %s240
    %p242 = scmp.eq.s32.totalorder %s22, 0
    %p243 = por %p241, %p242
    %p244 = scmp.le.s32.totalorder 1, %s16
    %p245 = scmp.lt.s32.totalorder %s16, 3
    %p246 = pnand %p244, %p245
    %p247 = pneg %p246
    // Predicated region
    $region9: #{pinn_forward.1} parent=5 // pred_check
      _
    $region10: #{pinn_forward.1} parent=5 // pred_check_branch
      %249 = sbr.rel (%p246) target = $region12
    $region11: #{pinn_forward.1} parent=5 // pred_region
      %s250 = ssub.s32 %s16, 1
      // Predicated region
      $region13: #{pinn_forward.1} parent=11 // pred_check
        %p251 = pneg %p63
      $region14: #{pinn_forward.1} parent=11 // pred_check_branch
        %253 = sbr.rel (%p251) target = $region16
      $region15: #{pinn_forward.1} parent=11 // pred_region
        _
      $region16: #{pinn_forward.1} parent=11 // pred_fallthru
        _
      // Predicated region
      $region17: #{pinn_forward.1} parent=11 // pred_check
        %p254 = pneg %p84
      $region18: #{pinn_forward.1} parent=11 // pred_check_branch
        %256 = sbr.rel (%p254) target = $region20
      $region19: #{pinn_forward.1} parent=11 // pred_region
        _
      $region20: #{pinn_forward.1} parent=11 // pred_fallthru
        _
      // Predicated region
      $region21: #{pinn_forward.1} parent=11 // pred_check
        %p257 = pneg %p105
      $region22: #{pinn_forward.1} parent=11 // pred_check_branch
        %259 = sbr.rel (%p257) target = $region24
      $region23: #{pinn_forward.1} parent=11 // pred_region
        _
      $region24: #{pinn_forward.1} parent=11 // pred_fallthru
        _
      // Predicated region
      $region25: #{pinn_forward.1} parent=11 // pred_check
        %p260 = pneg %p126
      $region26: #{pinn_forward.1} parent=11 // pred_check_branch
        %262 = sbr.rel (%p260) target = $region28
      $region27: #{pinn_forward.1} parent=11 // pred_region
        _
      $region28: #{pinn_forward.1} parent=11 // pred_fallthru
        _
      // Predicated region
      $region29: #{pinn_forward.1} parent=11 // pred_check
        %p263 = pneg %p147
      $region30: #{pinn_forward.1} parent=11 // pred_check_branch
        %265 = sbr.rel (%p263) target = $region32
      $region31: #{pinn_forward.1} parent=11 // pred_region
        _
      $region32: #{pinn_forward.1} parent=11 // pred_fallthru
        _
      // Predicated region
      $region33: #{pinn_forward.1} parent=11 // pred_check
        %p266 = pneg %p168
      $region34: #{pinn_forward.1} parent=11 // pred_check_branch
        %268 = sbr.rel (%p266) target = $region36
      $region35: #{pinn_forward.1} parent=11 // pred_region
        _
      $region36: #{pinn_forward.1} parent=11 // pred_fallthru
        _
      // Predicated region
      $region37: #{pinn_forward.1} parent=11 // pred_check
        %p269 = pneg %p189
      $region38: #{pinn_forward.1} parent=11 // pred_check_branch
        %271 = sbr.rel (%p269) target = $region40
      $region39: #{pinn_forward.1} parent=11 // pred_region
        _
      $region40: #{pinn_forward.1} parent=11 // pred_fallthru
        _
      // Predicated region
      $region41: #{pinn_forward.1} parent=11 // pred_check
        %p272 = pneg %p210
      $region42: #{pinn_forward.1} parent=11 // pred_check_branch
        %274 = sbr.rel (%p272) target = $region44
      $region43: #{pinn_forward.1} parent=11 // pred_region
        _
      $region44: #{pinn_forward.1} parent=11 // pred_fallthru
        _
    $region12: #{pinn_forward.1} parent=5 // pred_fallthru
      _
    %p275 = scmp.lt.s32.totalorder %s16, 2
    // Predicated region
    $region45: #{pinn_forward.1} parent=5 // pred_check
      %p276 = pneg %p275
    $region46: #{pinn_forward.1} parent=5 // pred_check_branch
      %278 = sbr.rel (%p276) target = $region48
    $region47: #{pinn_forward.1} parent=5 // pred_region
      // Predicated region
      $region49: #{pinn_forward.1} parent=47 // pred_check
        %p279 = pneg %p36
      $region50: #{pinn_forward.1} parent=47 // pred_check_branch
        %281 = sbr.rel (%p279) target = $region52
      $region51: #{pinn_forward.1} parent=47 // pred_region
        %s282 = smul.u32 4, %s16
        %p283 = scmp.lt.s32.totalorder %s282, 7
        %s284 = scalar_select %p283, %s282, 7
        %s285 = scalar_lea.vmem %s0, %s284
        %s286 = smul.u32 4, %s16
      $region52: #{pinn_forward.1} parent=47 // pred_fallthru
        _
    $region48: #{pinn_forward.1} parent=5 // pred_fallthru
      _
    %p287 = scmp.le.s32.totalorder 1, %s16
    %p288 = scmp.lt.s32.totalorder %s16, 3
    %p289 = pnand %p287, %p288
    %p290 = pneg %p289
    // Predicated region
    $region53: #{pinn_forward.1} parent=5 // pred_check
      _
    $region54: #{pinn_forward.1} parent=5 // pred_check_branch
      %292 = sbr.rel (%p289) target = $region56
    $region55: #{pinn_forward.1} parent=5 // pred_region
      %s293 = ssub.s32 %s16, 1
      %s294 = smul.u32 4, %s21
      %p295 = scmp.lt.s32.totalorder %s294, 7
      %s296 = scalar_select %p295, %s294, 7
      %s297 = scalar_lea.vmem %s0, %s296
      %p298 = pneg %p42
      %p299 = pneg %p39
      %p300 = pneg %p63
      %p301 = pneg %p60
      %p302 = pneg %p84
      %p303 = pneg %p81
      %p304 = pneg %p105
      %p305 = pneg %p102
      %p306 = pneg %p126
      %p307 = pneg %p123
      %p308 = pneg %p147
      %p309 = pneg %p144
      %p310 = pneg %p168
      %p311 = pneg %p165
      %p312 = pneg %p189
      %p313 = pneg %p186
      %p314 = pneg %p210
      %p315 = pneg %p207
      %p316 = pneg %p236
      %p317 = pneg %p233
      %s318 = smul.u32 4, %s21
      %p319 = scmp.lt.s32.totalorder %s318, 7
      %s320 = scalar_select %p319, %s318, 7
      %s321 = scalar_lea.vmem %s9, %s320
      %s322 = smul.u32 4, %s21
      %p323 = scmp.lt.s32.totalorder %s322, 7
      %s324 = scalar_select %p323, %s322, 7
      %s325 = scalar_lea.vmem %s0, %s324
      %s326 = smul.u32 4, %s21
      %s327 = smul.u32 4, %s21
      %p328 = scmp.lt.s32.totalorder %s327, 7
      %s329 = scalar_select %p328, %s327, 7
      %s330 = scalar_lea.vmem %s9, %s329
      %s331 = smul.u32 4, %s21
      %v332 = vld [vmem:[%s325] sm:$0xf]
      %v333 = vld [vmem:[%s1] sm:$0xff]
      %v334 = vld [vmem:[%s1 + $0x8] sm:$0xff]
      %336 = vset.pattern.permute.xlu0 0
      %337 = vperm.xlu0 %336, %v333
      %v338 = vpop.permute.xlu0 %337
      %341 = vset.pattern.permute.xlu0 0
      %342 = vperm.xlu0 %341, %v334
      %v343 = vpop.permute.xlu0 %342
      %v346 = vlaneseq
      %v347 = vshrl.u32 %v346, 7
      %v348 = vsub.s32 0, %v347
      %v349 = vrot.slane %v332, %v348
      %v350 = vlaneseq
      %v351 = vshrl.u32 %v350, 7
      %v352 = vsub.s32 1, %v351
      %v353 = vrot.slane %v332, %v352
      %v354 = vlaneseq
      %v355 = vshrl.u32 %v354, 7
      %v356 = vsub.s32 2, %v355
      %v357 = vrot.slane %v332, %v356
      %v358 = vlaneseq
      %v359 = vshrl.u32 %v358, 7
      %v360 = vsub.s32 3, %v359
      %v361 = vrot.slane %v332, %v360
      %v366 = vmul.f32 %v338, %v349
      %v367 = vmul.f32 %v338, %v353
      %v368 = vmul.f32 %v338, %v357
      %v369 = vmul.f32 %v338, %v361
      %v370 = vmul.f32 %v343, %v349
      %v371 = vmul.f32 %v343, %v353
      %v372 = vmul.f32 %v343, %v357
      %v373 = vmul.f32 %v343, %v361
      %v374 = vld [vmem:[%s2] sm:$0xff]
      %v375 = vld [vmem:[%s2 + $0x8] sm:$0xff]
      %377 = vset.pattern.permute.xlu0 0
      %378 = vperm.xlu0 %377, %v374
      %v379 = vpop.permute.xlu0 %378
      %382 = vset.pattern.permute.xlu0 0
      %383 = vperm.xlu0 %382, %v375
      %v384 = vpop.permute.xlu0 %383
      %v386 = vadd.f32 %v366, %v379
      %v387 = vadd.f32 %v367, %v379
      %v388 = vadd.f32 %v368, %v379
      %v389 = vadd.f32 %v369, %v379
      %v390 = vadd.f32 %v370, %v384
      %v391 = vadd.f32 %v371, %v384
      %v392 = vadd.f32 %v372, %v384
      %v393 = vadd.f32 %v373, %v384
      %v394 = vtanh.pop %v386
      %v395 = vtanh.pop %v387
      %v396 = vtanh.pop %v388
      %v397 = vtanh.pop %v389
      %v398 = vtanh.pop %v390
      %v399 = vtanh.pop %v391
      %v400 = vtanh.pop %v392
      %v401 = vtanh.pop %v393
      %v402 = vld [vmem:[%s3] sm:$0xff]
      %v403 = vld [vmem:[%s3 + $0x8] sm:$0xff]
      %v404 = vld [vmem:[%s4] sm:$0xff]
      %v405 = vld [vmem:[%s4 + $0x8] sm:$0xff]
      %407 = vset.pattern.permute.xlu0 0
      %408 = vperm.xlu0 %407, %v404
      %v409 = vpop.permute.xlu0 %408
      %412 = vset.pattern.permute.xlu0 0
      %413 = vperm.xlu0 %412, %v405
      %v414 = vpop.permute.xlu0 %413
      %vm416 = vcmask 130048
      %v418 = vsel %vm416, %v402, 0
      %v421 = vsel %vm416, %v403, 0
      %423 = vmatprep.subr.mxu0 %v395
      %424 = vmatpush1.msra.mxu0 %v394
      %425 = vmatprep.subr.mxu0 %v399
      %426 = vmatpush1.msra.mxu0 %v398
      %427 = vmatprep.subr.mxu0 0.0
      %428 = vmatpush1.msra.mxu0 0.0
      %429 = vmatprep.subr.mxu0 0.0
      %430 = vmatpush1.msra.mxu0 0.0
      %431 = vmatprep.subr.mxu0 0.0
      %432 = vmatpush1.msra.mxu0 0.0
      %433 = vmatprep.subr.mxu0 0.0
      %434 = vmatpush1.msra.mxu0 0.0
      %435 = vmatprep.subr.mxu0 0.0
      %436 = vmatpush1.msra.mxu0 0.0
      %437 = vmatprep.subr.mxu0 0.0
      %438 = vmatpush1.msra.mxu0 0.0
      %439 = vmatprep.subr.mxu0 0.0
      %440 = vmatpush1.msra.mxu0 0.0
      %441 = vmatprep.subr.mxu0 0.0
      %442 = vmatpush1.msra.mxu0 0.0
      %443 = vmatprep.subr.mxu0 0.0
      %444 = vmatpush1.msra.mxu0 0.0
      %445 = vmatprep.subr.mxu0 0.0
      %446 = vmatpush1.msra.mxu0 0.0
      %447 = vmatprep.subr.mxu0 0.0
      %448 = vmatpush1.msra.mxu0 0.0
      %449 = vmatprep.subr.mxu0 0.0
      %450 = vmatpush1.msra.mxu0 0.0
      %451 = vmatprep.subr.mxu0 0.0
      %452 = vmatpush1.msra.mxu0 0.0
      %453 = vmatprep.subr.mxu0 0.0
      %454 = vmatpush1.msra.mxu0 0.0
      %455 = vmatprep.subr.mxu0 0.0
      %456 = vmatpush1.msra.mxu0 0.0
      %457 = vmatprep.subr.mxu0 0.0
      %458 = vmatpush1.msra.mxu0 0.0
      %459 = vmatprep.subr.mxu0 0.0
      %460 = vmatpush1.msra.mxu0 0.0
      %461 = vmatprep.subr.mxu0 0.0
      %462 = vmatpush1.msra.mxu0 0.0
      %463 = vmatprep.subr.mxu0 0.0
      %464 = vmatpush1.msra.mxu0 0.0
      %465 = vmatprep.subr.mxu0 0.0
      %466 = vmatpush1.msra.mxu0 0.0
      %467 = vmatprep.subr.mxu0 0.0
      %468 = vmatpush1.msra.mxu0 0.0
      %469 = vmatprep.subr.mxu0 0.0
      %470 = vmatpush1.msra.mxu0 0.0
      %471 = vmatprep.subr.mxu0 0.0
      %472 = vmatpush1.msra.mxu0 0.0
      %473 = vmatprep.subr.mxu0 0.0
      %474 = vmatpush1.msra.mxu0 0.0
      %475 = vmatprep.subr.mxu0 0.0
      %476 = vmatpush1.msra.mxu0 0.0
      %477 = vmatprep.subr.mxu0 0.0
      %478 = vmatpush1.msra.mxu0 0.0
      %479 = vmatprep.subr.mxu0 0.0
      %480 = vmatpush1.msra.mxu0 0.0
      %481 = vmatprep.subr.mxu0 0.0
      %482 = vmatpush1.msra.mxu0 0.0
      %483 = vmatprep.subr.mxu0 0.0
      %484 = vmatpush1.msra.mxu0 0.0
      %485 = vmatprep.subr.mxu0 0.0
      %486 = vmatpush1.msra.mxu0 0.0
      %487 = vmatprep.mubr.f32.mxu0 0.0
      %488 = vmatmul.mubr.f32.gmra.mrb[0].mxu0 %v418
      %v489 = vpop.f32.mrb[0].mxu0
      %v490 = vadd.f32 %v409, %v489
      %v491 = vpop.f32.mrb[0].mxu0
      %v492 = vadd.f32 %v409, %v491
      %493 = vmatprep.mubr.f32.mxu0 0.0
      %494 = vmatmul.mubr.f32.gmra.mrb[0].mxu0 %v421
      %v495 = vpop.f32.mrb[0].mxu0
      %v496 = vadd.f32 %v414, %v495
      %v497 = vpop.f32.mrb[0].mxu0
      %v498 = vadd.f32 %v414, %v497
      %499 = vdwg.mxu0
      %500 = vmatprep.subr.mxu0 %v397
      %501 = vmatpush1.msra.mxu0 %v396
      %502 = vmatprep.subr.mxu0 %v401
      %503 = vmatpush1.msra.mxu0 %v400
      %504 = vmatprep.subr.mxu0 0.0
      %505 = vmatpush1.msra.mxu0 0.0
      %506 = vmatprep.subr.mxu0 0.0
      %507 = vmatpush1.msra.mxu0 0.0
      %508 = vmatprep.subr.mxu0 0.0
      %509 = vmatpush1.msra.mxu0 0.0
      %510 = vmatprep.subr.mxu0 0.0
      %511 = vmatpush1.msra.mxu0 0.0
      %512 = vmatprep.subr.mxu0 0.0
      %513 = vmatpush1.msra.mxu0 0.0
      %514 = vmatprep.subr.mxu0 0.0
      %515 = vmatpush1.msra.mxu0 0.0
      %516 = vmatprep.subr.mxu0 0.0
      %517 = vmatpush1.msra.mxu0 0.0
      %518 = vmatprep.subr.mxu0 0.0
      %519 = vmatpush1.msra.mxu0 0.0
      %520 = vmatprep.subr.mxu0 0.0
      %521 = vmatpush1.msra.mxu0 0.0
      %522 = vmatprep.subr.mxu0 0.0
      %523 = vmatpush1.msra.mxu0 0.0
      %524 = vmatprep.subr.mxu0 0.0
      %525 = vmatpush1.msra.mxu0 0.0
      %526 = vmatprep.subr.mxu0 0.0
      %527 = vmatpush1.msra.mxu0 0.0
      %528 = vmatprep.subr.mxu0 0.0
      %529 = vmatpush1.msra.mxu0 0.0
      %530 = vmatprep.subr.mxu0 0.0
      %531 = vmatpush1.msra.mxu0 0.0
      %532 = vmatprep.subr.mxu0 0.0
      %533 = vmatpush1.msra.mxu0 0.0
      %534 = vmatprep.subr.mxu0 0.0
      %535 = vmatpush1.msra.mxu0 0.0
      %536 = vmatprep.subr.mxu0 0.0
      %537 = vmatpush1.msra.mxu0 0.0
      %538 = vmatprep.subr.mxu0 0.0
      %539 = vmatpush1.msra.mxu0 0.0
      %540 = vmatprep.subr.mxu0 0.0
      %541 = vmatpush1.msra.mxu0 0.0
      %542 = vmatprep.subr.mxu0 0.0
      %543 = vmatpush1.msra.mxu0 0.0
      %544 = vmatprep.subr.mxu0 0.0
      %545 = vmatpush1.msra.mxu0 0.0
      %546 = vmatprep.subr.mxu0 0.0
      %547 = vmatpush1.msra.mxu0 0.0
      %548 = vmatprep.subr.mxu0 0.0
      %549 = vmatpush1.msra.mxu0 0.0
      %550 = vmatprep.subr.mxu0 0.0
      %551 = vmatpush1.msra.mxu0 0.0
      %552 = vmatprep.subr.mxu0 0.0
      %553 = vmatpush1.msra.mxu0 0.0
      %554 = vmatprep.subr.mxu0 0.0
      %555 = vmatpush1.msra.mxu0 0.0
      %556 = vmatprep.subr.mxu0 0.0
      %557 = vmatpush1.msra.mxu0 0.0
      %558 = vmatprep.subr.mxu0 0.0
      %559 = vmatpush1.msra.mxu0 0.0
      %560 = vmatprep.subr.mxu0 0.0
      %561 = vmatpush1.msra.mxu0 0.0
      %562 = vmatprep.subr.mxu0 0.0
      %563 = vmatpush1.msra.mxu0 0.0
      %564 = vmatprep.mubr.f32.mxu0 0.0
      %565 = vmatmul.mubr.f32.gmra.mrb[0].mxu0 %v418
      %v566 = vpop.f32.mrb[0].mxu0
      %v567 = vadd.f32 %v409, %v566
      %v568 = vpop.f32.mrb[0].mxu0
      %v569 = vadd.f32 %v409, %v568
      %570 = vmatprep.mubr.f32.mxu0 0.0
      %571 = vmatmul.mubr.f32.gmra.mrb[0].mxu0 %v421
      %v572 = vpop.f32.mrb[0].mxu0
      %v573 = vadd.f32 %v414, %v572
      %v574 = vpop.f32.mrb[0].mxu0
      %v575 = vadd.f32 %v414, %v574
      %576 = vdwg.mxu0
      %v577 = vtanh.pop %v490
      %v578 = vtanh.pop %v492
      %v579 = vtanh.pop %v567
      %v580 = vtanh.pop %v569
      %v581 = vtanh.pop %v496
      %v582 = vtanh.pop %v498
      %v583 = vtanh.pop %v573
      %v584 = vtanh.pop %v575
      %v585 = vld [vmem:[%s5] sm:$0xff]
      %v586 = vld [vmem:[%s5 + $0x8] sm:$0xff]
      %v587 = vld [vmem:[%s6] sm:$0xff]
      %v588 = vld [vmem:[%s6 + $0x8] sm:$0xff]
      %590 = vset.pattern.permute.xlu0 0
      %591 = vperm.xlu0 %590, %v587
      %v592 = vpop.permute.xlu0 %591
      %595 = vset.pattern.permute.xlu0 0
      %596 = vperm.xlu0 %595, %v588
      %v597 = vpop.permute.xlu0 %596
      %v600 = vsel %vm416, %v585, 0
      %v603 = vsel %vm416, %v586, 0
      %605 = vmatprep.subr.mxu0 %v578
      %606 = vmatpush1.msra.mxu0 %v577
      %607 = vmatprep.subr.mxu0 %v582
      %608 = vmatpush1.msra.mxu0 %v581
      %609 = vmatprep.subr.mxu0 0.0
      %610 = vmatpush1.msra.mxu0 0.0
      %611 = vmatprep.subr.mxu0 0.0
      %612 = vmatpush1.msra.mxu0 0.0
      %613 = vmatprep.subr.mxu0 0.0
      %614 = vmatpush1.msra.mxu0 0.0
      %615 = vmatprep.subr.mxu0 0.0
      %616 = vmatpush1.msra.mxu0 0.0
      %617 = vmatprep.subr.mxu0 0.0
      %618 = vmatpush1.msra.mxu0 0.0
      %619 = vmatprep.subr.mxu0 0.0
      %620 = vmatpush1.msra.mxu0 0.0
      %621 = vmatprep.subr.mxu0 0.0
      %622 = vmatpush1.msra.mxu0 0.0
      %623 = vmatprep.subr.mxu0 0.0
      %624 = vmatpush1.msra.mxu0 0.0
      %625 = vmatprep.subr.mxu0 0.0
      %626 = vmatpush1.msra.mxu0 0.0
      %627 = vmatprep.subr.mxu0 0.0
      %628 = vmatpush1.msra.mxu0 0.0
      %629 = vmatprep.subr.mxu0 0.0
      %630 = vmatpush1.msra.mxu0 0.0
      %631 = vmatprep.subr.mxu0 0.0
      %632 = vmatpush1.msra.mxu0 0.0
      %633 = vmatprep.subr.mxu0 0.0
      %634 = vmatpush1.msra.mxu0 0.0
      %635 = vmatprep.subr.mxu0 0.0
      %636 = vmatpush1.msra.mxu0 0.0
      %637 = vmatprep.subr.mxu0 0.0
      %638 = vmatpush1.msra.mxu0 0.0
      %639 = vmatprep.subr.mxu0 0.0
      %640 = vmatpush1.msra.mxu0 0.0
      %641 = vmatprep.subr.mxu0 0.0
      %642 = vmatpush1.msra.mxu0 0.0
      %643 = vmatprep.subr.mxu0 0.0
      %644 = vmatpush1.msra.mxu0 0.0
      %645 = vmatprep.subr.mxu0 0.0
      %646 = vmatpush1.msra.mxu0 0.0
      %647 = vmatprep.subr.mxu0 0.0
      %648 = vmatpush1.msra.mxu0 0.0
      %649 = vmatprep.subr.mxu0 0.0
      %650 = vmatpush1.msra.mxu0 0.0
      %651 = vmatprep.subr.mxu0 0.0
      %652 = vmatpush1.msra.mxu0 0.0
      %653 = vmatprep.subr.mxu0 0.0
      %654 = vmatpush1.msra.mxu0 0.0
      %655 = vmatprep.subr.mxu0 0.0
      %656 = vmatpush1.msra.mxu0 0.0
      %657 = vmatprep.subr.mxu0 0.0
      %658 = vmatpush1.msra.mxu0 0.0
      %659 = vmatprep.subr.mxu0 0.0
      %660 = vmatpush1.msra.mxu0 0.0
      %661 = vmatprep.subr.mxu0 0.0
      %662 = vmatpush1.msra.mxu0 0.0
      %663 = vmatprep.subr.mxu0 0.0
      %664 = vmatpush1.msra.mxu0 0.0
      %665 = vmatprep.subr.mxu0 0.0
      %666 = vmatpush1.msra.mxu0 0.0
      %667 = vmatprep.subr.mxu0 0.0
      %668 = vmatpush1.msra.mxu0 0.0
      %669 = vmatprep.mubr.f32.mxu0 0.0
      %670 = vmatmul.mubr.f32.gmra.mrb[0].mxu0 %v600
      %v671 = vpop.f32.mrb[0].mxu0
      %v672 = vadd.f32 %v592, %v671
      %v673 = vpop.f32.mrb[0].mxu0
      %v674 = vadd.f32 %v592, %v673
      %675 = vmatprep.mubr.f32.mxu0 0.0
      %676 = vmatmul.mubr.f32.gmra.mrb[0].mxu0 %v603
      %v677 = vpop.f32.mrb[0].mxu0
      %v678 = vadd.f32 %v597, %v677
      %v679 = vpop.f32.mrb[0].mxu0
      %v680 = vadd.f32 %v597, %v679
      %681 = vdwg.mxu0
      %682 = vmatprep.subr.mxu0 %v580
      %683 = vmatpush1.msra.mxu0 %v579
      %684 = vmatprep.subr.mxu0 %v584
      %685 = vmatpush1.msra.mxu0 %v583
      %686 = vmatprep.subr.mxu0 0.0
      %687 = vmatpush1.msra.mxu0 0.0
      %688 = vmatprep.subr.mxu0 0.0
      %689 = vmatpush1.msra.mxu0 0.0
      %690 = vmatprep.subr.mxu0 0.0
      %691 = vmatpush1.msra.mxu0 0.0
      %692 = vmatprep.subr.mxu0 0.0
      %693 = vmatpush1.msra.mxu0 0.0
      %694 = vmatprep.subr.mxu0 0.0
      %695 = vmatpush1.msra.mxu0 0.0
      %696 = vmatprep.subr.mxu0 0.0
      %697 = vmatpush1.msra.mxu0 0.0
      %698 = vmatprep.subr.mxu0 0.0
      %699 = vmatpush1.msra.mxu0 0.0
      %700 = vmatprep.subr.mxu0 0.0
      %701 = vmatpush1.msra.mxu0 0.0
      %702 = vmatprep.subr.mxu0 0.0
      %703 = vmatpush1.msra.mxu0 0.0
      %704 = vmatprep.subr.mxu0 0.0
      %705 = vmatpush1.msra.mxu0 0.0
      %706 = vmatprep.subr.mxu0 0.0
      %707 = vmatpush1.msra.mxu0 0.0
      %708 = vmatprep.subr.mxu0 0.0
      %709 = vmatpush1.msra.mxu0 0.0
      %710 = vmatprep.subr.mxu0 0.0
      %711 = vmatpush1.msra.mxu0 0.0
      %712 = vmatprep.subr.mxu0 0.0
      %713 = vmatpush1.msra.mxu0 0.0
      %714 = vmatprep.subr.mxu0 0.0
      %715 = vmatpush1.msra.mxu0 0.0
      %716 = vmatprep.subr.mxu0 0.0
      %717 = vmatpush1.msra.mxu0 0.0
      %718 = vmatprep.subr.mxu0 0.0
      %719 = vmatpush1.msra.mxu0 0.0
      %720 = vmatprep.subr.mxu0 0.0
      %721 = vmatpush1.msra.mxu0 0.0
      %722 = vmatprep.subr.mxu0 0.0
      %723 = vmatpush1.msra.mxu0 0.0
      %724 = vmatprep.subr.mxu0 0.0
      %725 = vmatpush1.msra.mxu0 0.0
      %726 = vmatprep.subr.mxu0 0.0
      %727 = vmatpush1.msra.mxu0 0.0
      %728 = vmatprep.subr.mxu0 0.0
      %729 = vmatpush1.msra.mxu0 0.0
      %730 = vmatprep.subr.mxu0 0.0
      %731 = vmatpush1.msra.mxu0 0.0
      %732 = vmatprep.subr.mxu0 0.0
      %733 = vmatpush1.msra.mxu0 0.0
      %734 = vmatprep.subr.mxu0 0.0
      %735 = vmatpush1.msra.mxu0 0.0
      %736 = vmatprep.subr.mxu0 0.0
      %737 = vmatpush1.msra.mxu0 0.0
      %738 = vmatprep.subr.mxu0 0.0
      %739 = vmatpush1.msra.mxu0 0.0
      %740 = vmatprep.subr.mxu0 0.0
      %741 = vmatpush1.msra.mxu0 0.0
      %742 = vmatprep.subr.mxu0 0.0
      %743 = vmatpush1.msra.mxu0 0.0
      %744 = vmatprep.subr.mxu0 0.0
      %745 = vmatpush1.msra.mxu0 0.0
      %746 = vmatprep.mubr.f32.mxu0 0.0
      %747 = vmatmul.mubr.f32.gmra.mrb[0].mxu0 %v600
      %v748 = vpop.f32.mrb[0].mxu0
      %v749 = vadd.f32 %v592, %v748
      %v750 = vpop.f32.mrb[0].mxu0
      %v751 = vadd.f32 %v592, %v750
      %752 = vmatprep.mubr.f32.mxu0 0.0
      %753 = vmatmul.mubr.f32.gmra.mrb[0].mxu0 %v603
      %v754 = vpop.f32.mrb[0].mxu0
      %v755 = vadd.f32 %v597, %v754
      %v756 = vpop.f32.mrb[0].mxu0
      %v757 = vadd.f32 %v597, %v756
      %758 = vdwg.mxu0
      %v759 = vtanh.pop %v672
      %v760 = vtanh.pop %v674
      %v761 = vtanh.pop %v749
      %v762 = vtanh.pop %v751
      %v763 = vtanh.pop %v678
      %v764 = vtanh.pop %v680
      %v765 = vtanh.pop %v755
      %v766 = vtanh.pop %v757
      %v767 = vld [vmem:[%s7] sm:$0xff]
      %v768 = vld [vmem:[%s7 + $0x8] sm:$0xff]
      %770 = vset.pattern.permute.xlu0 0
      %771 = vperm.xlu0 %770, %v767
      %v772 = vpop.permute.xlu0 %771
      %775 = vset.pattern.permute.xlu0 0
      %776 = vperm.xlu0 %775, %v768
      %v777 = vpop.permute.xlu0 %776
      %v779 = vmul.f32 %v772, %v759
      %v780 = vmul.f32 %v772, %v760
      %v781 = vmul.f32 %v772, %v761
      %v782 = vmul.f32 %v772, %v762
      %v783 = vmul.f32 %v777, %v763
      %v784 = vmul.f32 %v777, %v764
      %v785 = vmul.f32 %v777, %v765
      %v786 = vmul.f32 %v777, %v766
      %v787 = vadd.f32 %v779, %v783
      %v788 = vrot.slane %v787, 4
      %v789 = vadd.f32 %v787, %v788
      %v790 = vrot.slane %v789, 2
      %v791 = vadd.f32 %v789, %v790
      %v792 = vrot.slane %v791, 1
      %v793 = vadd.f32 %v791, %v792
      %v794 = vadd.f32 %v780, %v784
      %v795 = vrot.slane %v794, 4
      %v796 = vadd.f32 %v794, %v795
      %v797 = vrot.slane %v796, 2
      %v798 = vadd.f32 %v796, %v797
      %v799 = vrot.slane %v798, 1
      %v800 = vadd.f32 %v798, %v799
      %v801 = vadd.f32 %v781, %v785
      %v802 = vrot.slane %v801, 4
      %v803 = vadd.f32 %v801, %v802
      %v804 = vrot.slane %v803, 2
      %v805 = vadd.f32 %v803, %v804
      %v806 = vrot.slane %v805, 1
      %v807 = vadd.f32 %v805, %v806
      %v808 = vadd.f32 %v782, %v786
      %v809 = vrot.slane %v808, 4
      %v810 = vadd.f32 %v808, %v809
      %v811 = vrot.slane %v810, 2
      %v812 = vadd.f32 %v810, %v811
      %v813 = vrot.slane %v812, 1
      %v814 = vadd.f32 %v812, %v813
      %s815 = sld [smem:[#allocation2]]
      %v816 = vstv %s815
      %v817 = vadd.f32 %v793, %v816
      %v818 = vadd.f32 %v800, %v816
      %v819 = vadd.f32 %v807, %v816
      %v820 = vadd.f32 %v814, %v816
      %v825 = vcombine.low %v817, %v818
      %v826 = vcombine.low %v819, %v820
      %v828 = vunpack.c.l.s4 1966171168
      %v829 = vunpack.c.0.s8 %v828
      %v830 = vlaneseq
      %v831 = vshrl.u32 %v830, 7
      %v832 = vsub.s32 %v829, %v831
      %v833 = vrot.slane %v825, %v832
      %v835 = vunpack.c.l.s4 1966171168
      %v836 = vunpack.c.0.s8 %v835
      %v837 = vlaneseq
      %v838 = vshrl.u32 %v837, 7
      %v839 = vsub.s32 %v836, %v838
      %v840 = vrot.slane %v826, %v839
      %v841 = vcombine.low %v833, %v840
      %v843 = vunpack.c.l.s4 1966171168
      %v844 = vunpack.c.0.s8 %v843
      %v845 = vlaneseq
      %v846 = vshrl.u32 %v845, 7
      %v847 = vsub.s32 %v844, %v846
      %v848 = vrot.slane %v841, %v847
      %v850 = vlaneseq
      %vm851 = vcmp.ge.s32.totalorder %v850, 0
      %vm852 = vcmp.lt.s32.totalorder %v850, 512
      %vm853 = vmand %vm851, %vm852
      %854 = vst.msk [vmem:[%s330] sm:$0xf] %vm853, %v848
      %s855 = smul.u32 4, %s21
      %p856 = scmp.lt.s32.totalorder %s855, 7
      %s857 = scalar_select %p856, %s855, 7
      %s858 = scalar_lea.vmem %s9, %s857
      // Predicated region
      $region57: #{pinn_forward.1} parent=55 // pred_check
        %p859 = pneg %p233
      $region58: #{pinn_forward.1} parent=55 // pred_check_branch
        %861 = sbr.rel (%p859) target = $region60
      $region59: #{pinn_forward.1} parent=55 // pred_region
        %s862 = smul.u32 4, %s21
      $region60: #{pinn_forward.1} parent=55 // pred_fallthru
        _
    $region56: #{pinn_forward.1} parent=5 // pred_fallthru
      _
    %p863 = scmp.le.s32.totalorder 2, %s16
    // Predicated region
    $region61: #{pinn_forward.1} parent=5 // pred_check
      %p864 = pneg %p863
    $region62: #{pinn_forward.1} parent=5 // pred_check_branch
      %866 = sbr.rel (%p864) target = $region64
    $region63: #{pinn_forward.1} parent=5 // pred_region
      %s867 = ssub.s32 %s16, 2
      // Predicated region
      $region65: #{pinn_forward.1} parent=63 // pred_check
        %p868 = pneg %p239
      $region66: #{pinn_forward.1} parent=63 // pred_check_branch
        %870 = sbr.rel (%p868) target = $region68
      $region67: #{pinn_forward.1} parent=63 // pred_region
        %s871 = smul.u32 4, %s22
        %p872 = scmp.lt.s32.totalorder %s871, 7
        %s873 = scalar_select %p872, %s871, 7
        %s874 = scalar_lea.vmem %s9, %s873
      $region68: #{pinn_forward.1} parent=63 // pred_fallthru
        _
    $region64: #{pinn_forward.1} parent=5 // pred_fallthru
      _
  $region6: #{pinn_forward.1} parent=0 // loop_footer
    %s20 = sadd.s32 1, %s16
  $region7: #{pinn_forward.1} parent=0 // loop_footer_branch
    %15 = sbr.rel target = $region3
  $region8: #{pinn_forward.1} parent=0 // loop_exit
    _

</llo_original>
